<compile_context>
chip_gen: v7x
topology: tpu7x:2x2x1
jax: 0.10.0
libtpu: 0.0.40
codegen_flags: <defaults>
</compile_context>

<pallas_src>
import functools

import jax
import jax.numpy as jnp
from jax.experimental import pallas as pl
from jax.experimental.pallas import tpu as pltpu


def _round_up(a, b):
    return ((a + b - 1) // b) * b


def mlp_kernel(n_cls, x_ref, w1_ref, b1_ref, w2_ref, b2_ref, o_ref):
    x = x_ref[...]        # (In, T)   batch on lanes
    w1 = w1_ref[...]      # (H, In)   PyTorch layout, VMEM-resident
    b1 = b1_ref[...]      # (H, 1)
    w2 = w2_ref[...]      # (C8, H)   rows >= n_cls are zero
    b2 = b2_ref[...]      # (C8, 1)   rows >= n_cls are -1e30

    in_size = x.shape[0]
    hidden = w1.shape[0]

    # ---- layer1 + Sigmoid: In broadcast-FMAs on the VPU, lane-dense vregs ----
    h = w1[:, 0:1] * x[0:1, :]
    for k in range(1, in_size):
        h = h + w1[:, k:k + 1] * x[k:k + 1, :]
    h = h + b1
    h = 0.5 * (jnp.tanh(0.5 * h) + 1.0)        # sigmoid(v) = 0.5*(tanh(v/2)+1)

    # ---- layer2: hidden broadcast-FMAs -> logits (C8, T) ----
    z = w2[:, 0:1] * h[0:1, :]
    for k in range(1, hidden):
        z = z + w2[:, k:k + 1] * h[k:k + 1, :]
    z = z + b2                                  # padded class rows -> -1e30

    # ---- numerically-stable softmax over the class (sublane) axis ----
    # reductions only over the n_cls real rows (no full sublane reduce needed)
    m = z[0:1, :]
    for c in range(1, n_cls):
        m = jnp.maximum(m, z[c:c + 1, :])
    e = jnp.exp(z - m)                          # padded rows: exp(-1e30-m) == 0
    denom = e[0:1, :]
    for c in range(1, n_cls):
        denom = denom + e[c:c + 1, :]
    r = pl.reciprocal(denom, approx=True)       # EUP vrcp
    r = r * (2.0 - denom * r)                   # one Newton step -> ~f32 exact
    o_ref[...] = (e * r).astype(o_ref.dtype)    # lane-dense (C8, T) store


def prepare_params(w1, b1, w2, b2):
    """One-time conversion of PyTorch-layout params to kernel layout."""
    w1 = jnp.asarray(w1, jnp.float32)                 # (H, In), used as-is
    b1 = jnp.asarray(b1, jnp.float32).reshape(-1, 1)  # (H, 1)
    w2 = jnp.asarray(w2, jnp.float32)                 # (C, H)
    b2 = jnp.asarray(b2, jnp.float32)
    out_size, hidden = w2.shape
    c_pad = max(8, _round_up(out_size, 8))            # pad classes to sublanes
    w2_pad = jnp.zeros((c_pad, hidden), jnp.float32).at[:out_size, :].set(w2)
    b2_pad = jnp.full((c_pad, 1), -1e30, jnp.float32).at[:out_size, 0].set(b2)
    return w1, b1, w2_pad, b2_pad


@functools.partial(jax.jit, static_argnames=("out_size", "tile_n"))
def mlp_forward(x, w1, b1, w2_pad, b2_pad, *, out_size, tile_n=8192):
    """x: (N, In) float32. Params pre-laid-out via prepare_params()."""
    n, in_size = x.shape
    hidden = w1.shape[0]
    c_pad = w2_pad.shape[0]

    # batch lives on lanes -> tiles must be multiples of 128
    tile_n = max(128, (int(tile_n) // 128) * 128)
    n_lanes = _round_up(n, 128)
    # cap tile so multi-TC parts (v7x) get >= 2 grid steps when batch allows
    tile_n = min(tile_n, max(128, _round_up(pl.cdiv(n_lanes, 2), 128)))
    n_pad = _round_up(n_lanes, tile_n)

    # transpose + pad: (In, n_pad), features on sublanes, batch on lanes
    x_t = jnp.pad(x.T, ((0, 0), (0, n_pad - n)))

    grid = (n_pad // tile_n,)

    out_t = pl.pallas_call(
        functools.partial(mlp_kernel, out_size),
        out_shape=jax.ShapeDtypeStruct((c_pad, n_pad), jnp.float32),
        grid=grid,
        in_specs=[
            pl.BlockSpec((in_size, tile_n), lambda i: (0, i)),   # x tile
            pl.BlockSpec((hidden, in_size), lambda i: (0, 0)),   # w1 (resident)
            pl.BlockSpec((hidden, 1), lambda i: (0, 0)),         # b1 (resident)
            pl.BlockSpec((c_pad, hidden), lambda i: (0, 0)),     # w2 (resident)
            pl.BlockSpec((c_pad, 1), lambda i: (0, 0)),          # b2 (resident)
        ],
        out_specs=pl.BlockSpec((c_pad, tile_n), lambda i: (0, i)),
        compiler_params=pltpu.CompilerParams(
            dimension_semantics=("parallel",),   # megacore-shard batch tiles
            vmem_limit_bytes=32 * 1024 * 1024,   # tiny footprint, safe on v7x
        ),
    )(x_t, w1, b1, w2_pad, b2_pad)

    # strip class padding (rows 3..7 are exactly 0) and batch padding
    return out_t[:out_size, :n].T


def torch_linear_init(key, out_features, in_features):
    """Deterministic replica of PyTorch nn.Linear default init."""
    kw, kb = jax.random.split(key)
    bound = 1.0 / jnp.sqrt(jnp.float32(in_features))
    w = jax.random.uniform(kw, (out_features, in_features), jnp.float32, -bound, bound)
    b = jax.random.uniform(kb, (out_features,), jnp.float32, -bound, bound)
    return w, b


if __name__ == "__main__":
    # Iris-like shapes implied by the script: input_size=4, hidden=16, output=3
    input_size, hidden_size, output_size = 4, 16, 3
    batch = 8

    key = jax.random.PRNGKey(0)
    kx, k1, k2, kx2 = jax.random.split(key, 4)

    x = jax.random.normal(kx, (batch, input_size), jnp.float32)
    w1, b1 = torch_linear_init(k1, hidden_size, input_size)
    w2, b2 = torch_linear_init(k2, output_size, hidden_size)

    params = prepare_params(w1, b1, w2, b2)      # hoisted, one-time layout prep

    def reference(xv):
        h = jax.nn.sigmoid(xv @ w1.T + b1)
        return jax.nn.softmax(h @ w2.T + b2, axis=1)

    # --- small batch (single grid step) ---
    out = mlp_forward(x, *params, out_size=output_size)
    out = jax.block_until_ready(out)
    ref = reference(x)
    assert out.shape == (batch, output_size), out.shape
    assert jnp.allclose(out, ref, atol=1e-4, rtol=1e-4), "mismatch vs reference (small)"
    assert jnp.allclose(jnp.sum(out, axis=1), 1.0, atol=1e-5), "rows must sum to 1"

    # --- larger, non-multiple batch: exercises padding + multi-step parallel grid ---
    x_big = jax.random.normal(kx2, (1000, input_size), jnp.float32)
    out_big = mlp_forward(x_big, *params, out_size=output_size, tile_n=256)
    out_big = jax.block_until_ready(out_big)
    ref_big = reference(x_big)
    assert out_big.shape == (1000, output_size), out_big.shape
    assert jnp.allclose(out_big, ref_big, atol=1e-4, rtol=1e-4), "mismatch vs reference (big)"
    assert jnp.allclose(jnp.sum(out_big, axis=1), 1.0, atol=1e-5), "rows must sum to 1"

    print("KERNEL_OK")
</pallas_src>

<mosaic_0001>
module attributes {stable_mosaic.version = 11 : i64} {
  func.func @mlp_kernel(%arg0: i32, %arg1: memref<4x128xf32, #tpu.memory_space<vmem>>, %arg2: memref<16x4xf32, #tpu.memory_space<vmem>>, %arg3: memref<16x1xf32, #tpu.memory_space<vmem>>, %arg4: memref<8x16xf32, #tpu.memory_space<vmem>>, %arg5: memref<8x1xf32, #tpu.memory_space<vmem>>, %arg6: memref<8x128xf32, #tpu.memory_space<vmem>>) attributes {dimension_semantics = [#tpu.dimension_semantics<parallel>], iteration_bounds = array<i64: 1>, scalar_prefetch = 0 : i64, scratch_operands = 0 : i64, tpu.core_type = #tpu.core_type<tc>, window_params = [{transform_indices = @transform_0, window_bounds = array<i64: 4, 128>}, {pipeline_mode = #tpu.pipeline_mode<synchronous>, transform_indices = @transform_1, window_bounds = array<i64: 16, 4>}, {pipeline_mode = #tpu.pipeline_mode<synchronous>, transform_indices = @transform_2, window_bounds = array<i64: 16, 1>}, {pipeline_mode = #tpu.pipeline_mode<synchronous>, transform_indices = @transform_3, window_bounds = array<i64: 8, 16>}, {pipeline_mode = #tpu.pipeline_mode<synchronous>, transform_indices = @transform_4, window_bounds = array<i64: 8, 1>}, {transform_indices = @transform_5, window_bounds = array<i64: 8, 128>}]} {
    %c0 = arith.constant 0 : index
    %c0_0 = arith.constant 0 : index
    %0 = vector.load %arg1[%c0, %c0_0] : memref<4x128xf32, #tpu.memory_space<vmem>>, vector<4x128xf32>
    %c0_1 = arith.constant 0 : index
    %c0_2 = arith.constant 0 : index
    %1 = vector.load %arg2[%c0_1, %c0_2] : memref<16x4xf32, #tpu.memory_space<vmem>>, vector<16x4xf32>
    %c0_3 = arith.constant 0 : index
    %c0_4 = arith.constant 0 : index
    %2 = vector.load %arg3[%c0_3, %c0_4] : memref<16x1xf32, #tpu.memory_space<vmem>>, vector<16x1xf32>
    %c0_5 = arith.constant 0 : index
    %c0_6 = arith.constant 0 : index
    %3 = vector.load %arg4[%c0_5, %c0_6] : memref<8x16xf32, #tpu.memory_space<vmem>>, vector<8x16xf32>
    %c0_7 = arith.constant 0 : index
    %c0_8 = arith.constant 0 : index
    %4 = vector.load %arg5[%c0_7, %c0_8] : memref<8x1xf32, #tpu.memory_space<vmem>>, vector<8x1xf32>
    %5 = vector.extract_strided_slice %1 {offsets = [0, 0], sizes = [16, 1], strides = [1, 1]} : vector<16x4xf32> to vector<16x1xf32>
    %6 = vector.extract_strided_slice %0 {offsets = [0, 0], sizes = [1, 128], strides = [1, 1]} : vector<4x128xf32> to vector<1x128xf32>
    %7 = vector.broadcast %5 : vector<16x1xf32> to vector<16x128xf32>
    %8 = vector.broadcast %6 : vector<1x128xf32> to vector<16x128xf32>
    %9 = arith.mulf %7, %8 : vector<16x128xf32>
    %10 = vector.extract_strided_slice %1 {offsets = [0, 1], sizes = [16, 1], strides = [1, 1]} : vector<16x4xf32> to vector<16x1xf32>
    %11 = vector.extract_strided_slice %0 {offsets = [1, 0], sizes = [1, 128], strides = [1, 1]} : vector<4x128xf32> to vector<1x128xf32>
    %12 = vector.broadcast %10 : vector<16x1xf32> to vector<16x128xf32>
    %13 = vector.broadcast %11 : vector<1x128xf32> to vector<16x128xf32>
    %14 = arith.mulf %12, %13 : vector<16x128xf32>
    %15 = arith.addf %9, %14 : vector<16x128xf32>
    %16 = vector.extract_strided_slice %1 {offsets = [0, 2], sizes = [16, 1], strides = [1, 1]} : vector<16x4xf32> to vector<16x1xf32>
    %17 = vector.extract_strided_slice %0 {offsets = [2, 0], sizes = [1, 128], strides = [1, 1]} : vector<4x128xf32> to vector<1x128xf32>
    %18 = vector.broadcast %16 : vector<16x1xf32> to vector<16x128xf32>
    %19 = vector.broadcast %17 : vector<1x128xf32> to vector<16x128xf32>
    %20 = arith.mulf %18, %19 : vector<16x128xf32>
    %21 = arith.addf %15, %20 : vector<16x128xf32>
    %22 = vector.extract_strided_slice %1 {offsets = [0, 3], sizes = [16, 1], strides = [1, 1]} : vector<16x4xf32> to vector<16x1xf32>
    %23 = vector.extract_strided_slice %0 {offsets = [3, 0], sizes = [1, 128], strides = [1, 1]} : vector<4x128xf32> to vector<1x128xf32>
    %24 = vector.broadcast %22 : vector<16x1xf32> to vector<16x128xf32>
    %25 = vector.broadcast %23 : vector<1x128xf32> to vector<16x128xf32>
    %26 = arith.mulf %24, %25 : vector<16x128xf32>
    %27 = arith.addf %21, %26 : vector<16x128xf32>
    %28 = vector.broadcast %2 : vector<16x1xf32> to vector<16x128xf32>
    %29 = arith.addf %27, %28 : vector<16x128xf32>
    %cst = arith.constant 5.000000e-01 : f32
    %30 = vector.broadcast %cst : f32 to vector<16x128xf32>
    %31 = arith.mulf %30, %29 : vector<16x128xf32>
    %32 = math.tanh %31 : vector<16x128xf32>
    %cst_9 = arith.constant 1.000000e+00 : f32
    %33 = vector.broadcast %cst_9 : f32 to vector<16x128xf32>
    %34 = arith.addf %32, %33 : vector<16x128xf32>
    %cst_10 = arith.constant 5.000000e-01 : f32
    %35 = vector.broadcast %cst_10 : f32 to vector<16x128xf32>
    %36 = arith.mulf %35, %34 : vector<16x128xf32>
    %37 = vector.extract_strided_slice %3 {offsets = [0, 0], sizes = [8, 1], strides = [1, 1]} : vector<8x16xf32> to vector<8x1xf32>
    %38 = vector.extract_strided_slice %36 {offsets = [0, 0], sizes = [1, 128], strides = [1, 1]} : vector<16x128xf32> to vector<1x128xf32>
    %39 = vector.broadcast %37 : vector<8x1xf32> to vector<8x128xf32>
    %40 = vector.broadcast %38 : vector<1x128xf32> to vector<8x128xf32>
    %41 = arith.mulf %39, %40 : vector<8x128xf32>
    %42 = vector.extract_strided_slice %3 {offsets = [0, 1], sizes = [8, 1], strides = [1, 1]} : vector<8x16xf32> to vector<8x1xf32>
    %43 = vector.extract_strided_slice %36 {offsets = [1, 0], sizes = [1, 128], strides = [1, 1]} : vector<16x128xf32> to vector<1x128xf32>
    %44 = vector.broadcast %42 : vector<8x1xf32> to vector<8x128xf32>
    %45 = vector.broadcast %43 : vector<1x128xf32> to vector<8x128xf32>
    %46 = arith.mulf %44, %45 : vector<8x128xf32>
    %47 = arith.addf %41, %46 : vector<8x128xf32>
    %48 = vector.extract_strided_slice %3 {offsets = [0, 2], sizes = [8, 1], strides = [1, 1]} : vector<8x16xf32> to vector<8x1xf32>
    %49 = vector.extract_strided_slice %36 {offsets = [2, 0], sizes = [1, 128], strides = [1, 1]} : vector<16x128xf32> to vector<1x128xf32>
    %50 = vector.broadcast %48 : vector<8x1xf32> to vector<8x128xf32>
    %51 = vector.broadcast %49 : vector<1x128xf32> to vector<8x128xf32>
    %52 = arith.mulf %50, %51 : vector<8x128xf32>
    %53 = arith.addf %47, %52 : vector<8x128xf32>
    %54 = vector.extract_strided_slice %3 {offsets = [0, 3], sizes = [8, 1], strides = [1, 1]} : vector<8x16xf32> to vector<8x1xf32>
    %55 = vector.extract_strided_slice %36 {offsets = [3, 0], sizes = [1, 128], strides = [1, 1]} : vector<16x128xf32> to vector<1x128xf32>
    %56 = vector.broadcast %54 : vector<8x1xf32> to vector<8x128xf32>
    %57 = vector.broadcast %55 : vector<1x128xf32> to vector<8x128xf32>
    %58 = arith.mulf %56, %57 : vector<8x128xf32>
    %59 = arith.addf %53, %58 : vector<8x128xf32>
    %60 = vector.extract_strided_slice %3 {offsets = [0, 4], sizes = [8, 1], strides = [1, 1]} : vector<8x16xf32> to vector<8x1xf32>
    %61 = vector.extract_strided_slice %36 {offsets = [4, 0], sizes = [1, 128], strides = [1, 1]} : vector<16x128xf32> to vector<1x128xf32>
    %62 = vector.broadcast %60 : vector<8x1xf32> to vector<8x128xf32>
    %63 = vector.broadcast %61 : vector<1x128xf32> to vector<8x128xf32>
    %64 = arith.mulf %62, %63 : vector<8x128xf32>
    %65 = arith.addf %59, %64 : vector<8x128xf32>
    %66 = vector.extract_strided_slice %3 {offsets = [0, 5], sizes = [8, 1], strides = [1, 1]} : vector<8x16xf32> to vector<8x1xf32>
    %67 = vector.extract_strided_slice %36 {offsets = [5, 0], sizes = [1, 128], strides = [1, 1]} : vector<16x128xf32> to vector<1x128xf32>
    %68 = vector.broadcast %66 : vector<8x1xf32> to vector<8x128xf32>
    %69 = vector.broadcast %67 : vector<1x128xf32> to vector<8x128xf32>
    %70 = arith.mulf %68, %69 : vector<8x128xf32>
    %71 = arith.addf %65, %70 : vector<8x128xf32>
    %72 = vector.extract_strided_slice %3 {offsets = [0, 6], sizes = [8, 1], strides = [1, 1]} : vector<8x16xf32> to vector<8x1xf32>
    %73 = vector.extract_strided_slice %36 {offsets = [6, 0], sizes = [1, 128], strides = [1, 1]} : vector<16x128xf32> to vector<1x128xf32>
    %74 = vector.broadcast %72 : vector<8x1xf32> to vector<8x128xf32>
    %75 = vector.broadcast %73 : vector<1x128xf32> to vector<8x128xf32>
    %76 = arith.mulf %74, %75 : vector<8x128xf32>
    %77 = arith.addf %71, %76 : vector<8x128xf32>
    %78 = vector.extract_strided_slice %3 {offsets = [0, 7], sizes = [8, 1], strides = [1, 1]} : vector<8x16xf32> to vector<8x1xf32>
    %79 = vector.extract_strided_slice %36 {offsets = [7, 0], sizes = [1, 128], strides = [1, 1]} : vector<16x128xf32> to vector<1x128xf32>
    %80 = vector.broadcast %78 : vector<8x1xf32> to vector<8x128xf32>
    %81 = vector.broadcast %79 : vector<1x128xf32> to vector<8x128xf32>
    %82 = arith.mulf %80, %81 : vector<8x128xf32>
    %83 = arith.addf %77, %82 : vector<8x128xf32>
    %84 = vector.extract_strided_slice %3 {offsets = [0, 8], sizes = [8, 1], strides = [1, 1]} : vector<8x16xf32> to vector<8x1xf32>
    %85 = vector.extract_strided_slice %36 {offsets = [8, 0], sizes = [1, 128], strides = [1, 1]} : vector<16x128xf32> to vector<1x128xf32>
    %86 = vector.broadcast %84 : vector<8x1xf32> to vector<8x128xf32>
    %87 = vector.broadcast %85 : vector<1x128xf32> to vector<8x128xf32>
    %88 = arith.mulf %86, %87 : vector<8x128xf32>
    %89 = arith.addf %83, %88 : vector<8x128xf32>
    %90 = vector.extract_strided_slice %3 {offsets = [0, 9], sizes = [8, 1], strides = [1, 1]} : vector<8x16xf32> to vector<8x1xf32>
    %91 = vector.extract_strided_slice %36 {offsets = [9, 0], sizes = [1, 128], strides = [1, 1]} : vector<16x128xf32> to vector<1x128xf32>
    %92 = vector.broadcast %90 : vector<8x1xf32> to vector<8x128xf32>
    %93 = vector.broadcast %91 : vector<1x128xf32> to vector<8x128xf32>
    %94 = arith.mulf %92, %93 : vector<8x128xf32>
    %95 = arith.addf %89, %94 : vector<8x128xf32>
    %96 = vector.extract_strided_slice %3 {offsets = [0, 10], sizes = [8, 1], strides = [1, 1]} : vector<8x16xf32> to vector<8x1xf32>
    %97 = vector.extract_strided_slice %36 {offsets = [10, 0], sizes = [1, 128], strides = [1, 1]} : vector<16x128xf32> to vector<1x128xf32>
    %98 = vector.broadcast %96 : vector<8x1xf32> to vector<8x128xf32>
    %99 = vector.broadcast %97 : vector<1x128xf32> to vector<8x128xf32>
    %100 = arith.mulf %98, %99 : vector<8x128xf32>
    %101 = arith.addf %95, %100 : vector<8x128xf32>
    %102 = vector.extract_strided_slice %3 {offsets = [0, 11], sizes = [8, 1], strides = [1, 1]} : vector<8x16xf32> to vector<8x1xf32>
    %103 = vector.extract_strided_slice %36 {offsets = [11, 0], sizes = [1, 128], strides = [1, 1]} : vector<16x128xf32> to vector<1x128xf32>
    %104 = vector.broadcast %102 : vector<8x1xf32> to vector<8x128xf32>
    %105 = vector.broadcast %103 : vector<1x128xf32> to vector<8x128xf32>
    %106 = arith.mulf %104, %105 : vector<8x128xf32>
    %107 = arith.addf %101, %106 : vector<8x128xf32>
    %108 = vector.extract_strided_slice %3 {offsets = [0, 12], sizes = [8, 1], strides = [1, 1]} : vector<8x16xf32> to vector<8x1xf32>
    %109 = vector.extract_strided_slice %36 {offsets = [12, 0], sizes = [1, 128], strides = [1, 1]} : vector<16x128xf32> to vector<1x128xf32>
    %110 = vector.broadcast %108 : vector<8x1xf32> to vector<8x128xf32>
    %111 = vector.broadcast %109 : vector<1x128xf32> to vector<8x128xf32>
    %112 = arith.mulf %110, %111 : vector<8x128xf32>
    %113 = arith.addf %107, %112 : vector<8x128xf32>
    %114 = vector.extract_strided_slice %3 {offsets = [0, 13], sizes = [8, 1], strides = [1, 1]} : vector<8x16xf32> to vector<8x1xf32>
    %115 = vector.extract_strided_slice %36 {offsets = [13, 0], sizes = [1, 128], strides = [1, 1]} : vector<16x128xf32> to vector<1x128xf32>
    %116 = vector.broadcast %114 : vector<8x1xf32> to vector<8x128xf32>
    %117 = vector.broadcast %115 : vector<1x128xf32> to vector<8x128xf32>
    %118 = arith.mulf %116, %117 : vector<8x128xf32>
    %119 = arith.addf %113, %118 : vector<8x128xf32>
    %120 = vector.extract_strided_slice %3 {offsets = [0, 14], sizes = [8, 1], strides = [1, 1]} : vector<8x16xf32> to vector<8x1xf32>
    %121 = vector.extract_strided_slice %36 {offsets = [14, 0], sizes = [1, 128], strides = [1, 1]} : vector<16x128xf32> to vector<1x128xf32>
    %122 = vector.broadcast %120 : vector<8x1xf32> to vector<8x128xf32>
    %123 = vector.broadcast %121 : vector<1x128xf32> to vector<8x128xf32>
    %124 = arith.mulf %122, %123 : vector<8x128xf32>
    %125 = arith.addf %119, %124 : vector<8x128xf32>
    %126 = vector.extract_strided_slice %3 {offsets = [0, 15], sizes = [8, 1], strides = [1, 1]} : vector<8x16xf32> to vector<8x1xf32>
    %127 = vector.extract_strided_slice %36 {offsets = [15, 0], sizes = [1, 128], strides = [1, 1]} : vector<16x128xf32> to vector<1x128xf32>
    %128 = vector.broadcast %126 : vector<8x1xf32> to vector<8x128xf32>
    %129 = vector.broadcast %127 : vector<1x128xf32> to vector<8x128xf32>
    %130 = arith.mulf %128, %129 : vector<8x128xf32>
    %131 = arith.addf %125, %130 : vector<8x128xf32>
    %132 = vector.broadcast %4 : vector<8x1xf32> to vector<8x128xf32>
    %133 = arith.addf %131, %132 : vector<8x128xf32>
    %134 = vector.extract_strided_slice %133 {offsets = [0, 0], sizes = [1, 128], strides = [1, 1]} : vector<8x128xf32> to vector<1x128xf32>
    %135 = vector.extract_strided_slice %133 {offsets = [1, 0], sizes = [1, 128], strides = [1, 1]} : vector<8x128xf32> to vector<1x128xf32>
    %136 = arith.maximumf %134, %135 : vector<1x128xf32>
    %137 = vector.extract_strided_slice %133 {offsets = [2, 0], sizes = [1, 128], strides = [1, 1]} : vector<8x128xf32> to vector<1x128xf32>
    %138 = arith.maximumf %136, %137 : vector<1x128xf32>
    %139 = vector.broadcast %138 : vector<1x128xf32> to vector<8x128xf32>
    %140 = arith.subf %133, %139 : vector<8x128xf32>
    %141 = math.exp %140 : vector<8x128xf32>
    %142 = vector.extract_strided_slice %141 {offsets = [0, 0], sizes = [1, 128], strides = [1, 1]} : vector<8x128xf32> to vector<1x128xf32>
    %143 = vector.extract_strided_slice %141 {offsets = [1, 0], sizes = [1, 128], strides = [1, 1]} : vector<8x128xf32> to vector<1x128xf32>
    %144 = arith.addf %142, %143 : vector<1x128xf32>
    %145 = vector.extract_strided_slice %141 {offsets = [2, 0], sizes = [1, 128], strides = [1, 1]} : vector<8x128xf32> to vector<1x128xf32>
    %146 = arith.addf %144, %145 : vector<1x128xf32>
    %147 = tpu.reciprocal %146 {approx = true} : vector<1x128xf32> -> vector<1x128xf32>
    %148 = arith.mulf %146, %147 : vector<1x128xf32>
    %cst_11 = arith.constant 2.000000e+00 : f32
    %149 = vector.broadcast %cst_11 : f32 to vector<1x128xf32>
    %150 = arith.subf %149, %148 : vector<1x128xf32>
    %151 = arith.mulf %147, %150 : vector<1x128xf32>
    %152 = vector.broadcast %151 : vector<1x128xf32> to vector<8x128xf32>
    %153 = arith.mulf %141, %152 : vector<8x128xf32>
    %c0_12 = arith.constant 0 : index
    %c0_13 = arith.constant 0 : index
    %154 = vector.load %arg6[%c0_12, %c0_13] : memref<8x128xf32, #tpu.memory_space<vmem>>, vector<8x128xf32>
    tpu.vector_store %arg6[%c0_12, %c0_13], %153 {strides = array<i32>} : memref<8x128xf32, #tpu.memory_space<vmem>>, vector<8x128xf32>,
    return
  }
  func.func @transform_0(%arg0: i32) -> (i32, i32) {
    %c0_i32 = arith.constant 0 : i32
    %c0_i32_0 = arith.constant 0 : i32
    return %c0_i32, %arg0 : i32, i32
  }
  func.func @transform_1(%arg0: i32) -> (i32, i32) {
    %c0_i32 = arith.constant 0 : i32
    %c0_i32_0 = arith.constant 0 : i32
    %c0_i32_1 = arith.constant 0 : i32
    return %c0_i32, %c0_i32_0 : i32, i32
  }
  func.func @transform_2(%arg0: i32) -> (i32, i32) {
    %c0_i32 = arith.constant 0 : i32
    %c0_i32_0 = arith.constant 0 : i32
    %c0_i32_1 = arith.constant 0 : i32
    return %c0_i32, %c0_i32_0 : i32, i32
  }
  func.func @transform_3(%arg0: i32) -> (i32, i32) {
    %c0_i32 = arith.constant 0 : i32
    %c0_i32_0 = arith.constant 0 : i32
    %c0_i32_1 = arith.constant 0 : i32
    return %c0_i32, %c0_i32_0 : i32, i32
  }
  func.func @transform_4(%arg0: i32) -> (i32, i32) {
    %c0_i32 = arith.constant 0 : i32
    %c0_i32_0 = arith.constant 0 : i32
    %c0_i32_1 = arith.constant 0 : i32
    return %c0_i32, %c0_i32_0 : i32, i32
  }
  func.func @transform_5(%arg0: i32) -> (i32, i32) {
    %c0_i32 = arith.constant 0 : i32
    %c0_i32_0 = arith.constant 0 : i32
    return %c0_i32, %arg0 : i32, i32
  }
}

</mosaic_0001>

<llo_original>
// kernel: mlp_forward.1
$region0: #{mlp_forward.1}
  #allocation0 [shape = 'u32[]', space=smem, size = 0x4, offset = 0x4, fixed_abs, tag = 'smem constant byte address 0x4 - core index']
  #allocation1 [shape = 'u32[144,128]{1,0:T(1,128)}', space=vmem, size = 0x12000, scoped, tag = 'internal scratch']
  %s0 = inlined_call_operand.vmem [shape: f32[4,128], index: 0, kind: input, shape index: {}]
  %s1 = inlined_call_operand.vmem [shape: f32[16,4], index: 1, kind: input, shape index: {}]
  %s2 = inlined_call_operand.vmem [shape: f32[16,1], index: 2, kind: input, shape index: {}]
  %s3 = inlined_call_operand.vmem [shape: f32[8,16], index: 3, kind: input, shape index: {}]
  %s4 = inlined_call_operand.vmem [shape: f32[8,1], index: 4, kind: input, shape index: {}]
  %s5 = inlined_call_operand.vmem [shape: f32[8,128], index: 5, kind: output, shape index: {}]
  %s6 = sld [smem:[#allocation0]]
  $region30: #{mlp_forward.1} parent=0
    _
  %s8 = ssub.s32 1, %s6
  %s9 = scalar_select 0, %s8, %s6
  // Predicated region
  $region2: #{mlp_forward.1} parent=0 // pred_check
    _
  $region3: #{mlp_forward.1} parent=0 // pred_check_branch
    %11 = sbr.rel (0) target = $region5
  $region4: #{mlp_forward.1} parent=0 // pred_region
    _
  $region5: #{mlp_forward.1} parent=0 // pred_fallthru
    _
  // Predicated region
  $region6: #{mlp_forward.1} parent=0 // pred_check
    _
  $region7: #{mlp_forward.1} parent=0 // pred_check_branch
    %13 = sbr.rel (0) target = $region9
  $region8: #{mlp_forward.1} parent=0 // pred_region
    _
  $region9: #{mlp_forward.1} parent=0 // pred_fallthru
    _
  // Predicated region
  $region10: #{mlp_forward.1} parent=0 // pred_check
    _
  $region11: #{mlp_forward.1} parent=0 // pred_check_branch
    %15 = sbr.rel (0) target = $region13
  $region12: #{mlp_forward.1} parent=0 // pred_region
    _
  $region13: #{mlp_forward.1} parent=0 // pred_fallthru
    _
  // Predicated region
  $region14: #{mlp_forward.1} parent=0 // pred_check
    _
  $region15: #{mlp_forward.1} parent=0 // pred_check_branch
    %17 = sbr.rel (0) target = $region17
  $region16: #{mlp_forward.1} parent=0 // pred_region
    _
  $region17: #{mlp_forward.1} parent=0 // pred_fallthru
    _
  // Predicated region
  $region18: #{mlp_forward.1} parent=0 // pred_check
    _
  $region19: #{mlp_forward.1} parent=0 // pred_check_branch
    %19 = sbr.rel (0) target = $region21
  $region20: #{mlp_forward.1} parent=0 // pred_region
    _
  $region21: #{mlp_forward.1} parent=0 // pred_fallthru
    _
  %v20 = vld [vmem:[%s0] sm:$0xf]
  %v21 = vld [vmem:[%s1] sm:$0xff]
  %v22 = vld [vmem:[%s1 + $0x8] sm:$0xff]
  %v23 = vld [vmem:[%s2] sm:$0xff]
  %v24 = vld [vmem:[%s2 + $0x8] sm:$0xff]
  %v25 = vld [vmem:[%s3] sm:$0xff]
  %v26 = vld [vmem:[%s4] sm:$0xff]
  %28 = vset.pattern.permute.xlu0 0
  %29 = vperm.xlu0 %28, %v21
  %v30 = vpop.permute.xlu0 %29
  %33 = vset.pattern.permute.xlu0 0
  %34 = vperm.xlu0 %33, %v22
  %v35 = vpop.permute.xlu0 %34
  %v37 = vlaneseq
  %v38 = vshrl.u32 %v37, 7
  %v39 = vsub.s32 0, %v38
  %v40 = vrot.slane %v20, %v39
  %v41 = vmul.f32 %v30, %v40
  %v42 = vmul.f32 %v35, %v40
  %43 = vset.pattern.permute.xlu0 1
  %44 = vperm.xlu0 %43, %v21
  %v45 = vpop.permute.xlu0 %44
  %47 = vset.pattern.permute.xlu0 1
  %48 = vperm.xlu0 %47, %v22
  %v49 = vpop.permute.xlu0 %48
  %v51 = vlaneseq
  %v52 = vshrl.u32 %v51, 7
  %v53 = vsub.s32 1, %v52
  %v54 = vrot.slane %v20, %v53
  %v55 = vmul.f32 %v45, %v54
  %v56 = vmul.f32 %v49, %v54
  %v57 = vadd.f32 %v41, %v55
  %v58 = vadd.f32 %v42, %v56
  %59 = vset.pattern.permute.xlu0 2
  %60 = vperm.xlu0 %59, %v21
  %v61 = vpop.permute.xlu0 %60
  %63 = vset.pattern.permute.xlu0 2
  %64 = vperm.xlu0 %63, %v22
  %v65 = vpop.permute.xlu0 %64
  %v67 = vlaneseq
  %v68 = vshrl.u32 %v67, 7
  %v69 = vsub.s32 2, %v68
  %v70 = vrot.slane %v20, %v69
  %v71 = vmul.f32 %v61, %v70
  %v72 = vmul.f32 %v65, %v70
  %v73 = vadd.f32 %v57, %v71
  %v74 = vadd.f32 %v58, %v72
  %75 = vset.pattern.permute.xlu0 3
  %76 = vperm.xlu0 %75, %v21
  %v77 = vpop.permute.xlu0 %76
  %79 = vset.pattern.permute.xlu0 3
  %80 = vperm.xlu0 %79, %v22
  %v81 = vpop.permute.xlu0 %80
  %v83 = vlaneseq
  %v84 = vshrl.u32 %v83, 7
  %v85 = vsub.s32 3, %v84
  %v86 = vrot.slane %v20, %v85
  %v87 = vmul.f32 %v77, %v86
  %v88 = vmul.f32 %v81, %v86
  %v89 = vadd.f32 %v73, %v87
  %v90 = vadd.f32 %v74, %v88
  %92 = vset.pattern.permute.xlu0 0
  %93 = vperm.xlu0 %92, %v23
  %v94 = vpop.permute.xlu0 %93
  %97 = vset.pattern.permute.xlu0 0
  %98 = vperm.xlu0 %97, %v24
  %v99 = vpop.permute.xlu0 %98
  %v101 = vadd.f32 %v89, %v94
  %v102 = vadd.f32 %v90, %v99
  %v103 = vmul.f32 %v101, 0.5
  %v104 = vmul.f32 %v102, 0.5
  %v105 = vtanh.pop %v103
  %v106 = vtanh.pop %v104
  %v107 = vadd.f32 %v105, 1.0
  %v108 = vadd.f32 %v106, 1.0
  %v109 = vmul.f32 %v107, 0.5
  %v110 = vmul.f32 %v108, 0.5
  %112 = vset.pattern.permute.xlu0 0
  %113 = vperm.xlu0 %112, %v25
  %v114 = vpop.permute.xlu0 %113
  %v116 = vlaneseq
  %v117 = vshrl.u32 %v116, 7
  %v118 = vsub.s32 0, %v117
  %v119 = vrot.slane %v109, %v118
  %v120 = vmul.f32 %v114, %v119
  %121 = vset.pattern.permute.xlu0 1
  %122 = vperm.xlu0 %121, %v25
  %v123 = vpop.permute.xlu0 %122
  %v125 = vlaneseq
  %v126 = vshrl.u32 %v125, 7
  %v127 = vsub.s32 1, %v126
  %v128 = vrot.slane %v109, %v127
  %v129 = vmul.f32 %v123, %v128
  %v130 = vadd.f32 %v120, %v129
  %131 = vset.pattern.permute.xlu0 2
  %132 = vperm.xlu0 %131, %v25
  %v133 = vpop.permute.xlu0 %132
  %v135 = vlaneseq
  %v136 = vshrl.u32 %v135, 7
  %v137 = vsub.s32 2, %v136
  %v138 = vrot.slane %v109, %v137
  %v139 = vmul.f32 %v133, %v138
  %v140 = vadd.f32 %v130, %v139
  %141 = vset.pattern.permute.xlu0 3
  %142 = vperm.xlu0 %141, %v25
  %v143 = vpop.permute.xlu0 %142
  %v145 = vlaneseq
  %v146 = vshrl.u32 %v145, 7
  %v147 = vsub.s32 3, %v146
  %v148 = vrot.slane %v109, %v147
  %v149 = vmul.f32 %v143, %v148
  %v150 = vadd.f32 %v140, %v149
  %151 = vset.pattern.permute.xlu0 4
  %152 = vperm.xlu0 %151, %v25
  %v153 = vpop.permute.xlu0 %152
  %v155 = vlaneseq
  %v156 = vshrl.u32 %v155, 7
  %v157 = vsub.s32 4, %v156
  %v158 = vrot.slane %v109, %v157
  %v159 = vmul.f32 %v153, %v158
  %v160 = vadd.f32 %v150, %v159
  %161 = vset.pattern.permute.xlu0 5
  %162 = vperm.xlu0 %161, %v25
  %v163 = vpop.permute.xlu0 %162
  %v165 = vlaneseq
  %v166 = vshrl.u32 %v165, 7
  %v167 = vsub.s32 5, %v166
  %v168 = vrot.slane %v109, %v167
  %v169 = vmul.f32 %v163, %v168
  %v170 = vadd.f32 %v160, %v169
  %171 = vset.pattern.permute.xlu0 6
  %172 = vperm.xlu0 %171, %v25
  %v173 = vpop.permute.xlu0 %172
  %v175 = vlaneseq
  %v176 = vshrl.u32 %v175, 7
  %v177 = vsub.s32 6, %v176
  %v178 = vrot.slane %v109, %v177
  %v179 = vmul.f32 %v173, %v178
  %v180 = vadd.f32 %v170, %v179
  %181 = vset.pattern.permute.xlu0 7
  %182 = vperm.xlu0 %181, %v25
  %v183 = vpop.permute.xlu0 %182
  %v185 = vlaneseq
  %v186 = vshrl.u32 %v185, 7
  %v187 = vsub.s32 7, %v186
  %v188 = vrot.slane %v109, %v187
  %v189 = vmul.f32 %v183, %v188
  %v190 = vadd.f32 %v180, %v189
  %191 = vset.pattern.permute.xlu0 8
  %192 = vperm.xlu0 %191, %v25
  %v193 = vpop.permute.xlu0 %192
  %v195 = vlaneseq
  %v196 = vshrl.u32 %v195, 7
  %v197 = vsub.s32 0, %v196
  %v198 = vrot.slane %v110, %v197
  %v199 = vmul.f32 %v193, %v198
  %v200 = vadd.f32 %v190, %v199
  %201 = vset.pattern.permute.xlu0 9
  %202 = vperm.xlu0 %201, %v25
  %v203 = vpop.permute.xlu0 %202
  %v205 = vlaneseq
  %v206 = vshrl.u32 %v205, 7
  %v207 = vsub.s32 1, %v206
  %v208 = vrot.slane %v110, %v207
  %v209 = vmul.f32 %v203, %v208
  %v210 = vadd.f32 %v200, %v209
  %211 = vset.pattern.permute.xlu0 10
  %212 = vperm.xlu0 %211, %v25
  %v213 = vpop.permute.xlu0 %212
  %v215 = vlaneseq
  %v216 = vshrl.u32 %v215, 7
  %v217 = vsub.s32 2, %v216
  %v218 = vrot.slane %v110, %v217
  %v219 = vmul.f32 %v213, %v218
  %v220 = vadd.f32 %v210, %v219
  %221 = vset.pattern.permute.xlu0 11
  %222 = vperm.xlu0 %221, %v25
  %v223 = vpop.permute.xlu0 %222
  %v225 = vlaneseq
  %v226 = vshrl.u32 %v225, 7
  %v227 = vsub.s32 3, %v226
  %v228 = vrot.slane %v110, %v227
  %v229 = vmul.f32 %v223, %v228
  %v230 = vadd.f32 %v220, %v229
  %231 = vset.pattern.permute.xlu0 12
  %232 = vperm.xlu0 %231, %v25
  %v233 = vpop.permute.xlu0 %232
  %v235 = vlaneseq
  %v236 = vshrl.u32 %v235, 7
  %v237 = vsub.s32 4, %v236
  %v238 = vrot.slane %v110, %v237
  %v239 = vmul.f32 %v233, %v238
  %v240 = vadd.f32 %v230, %v239
  %241 = vset.pattern.permute.xlu0 13
  %242 = vperm.xlu0 %241, %v25
  %v243 = vpop.permute.xlu0 %242
  %v245 = vlaneseq
  %v246 = vshrl.u32 %v245, 7
  %v247 = vsub.s32 5, %v246
  %v248 = vrot.slane %v110, %v247
  %v249 = vmul.f32 %v243, %v248
  %v250 = vadd.f32 %v240, %v249
  %251 = vset.pattern.permute.xlu0 14
  %252 = vperm.xlu0 %251, %v25
  %v253 = vpop.permute.xlu0 %252
  %v255 = vlaneseq
  %v256 = vshrl.u32 %v255, 7
  %v257 = vsub.s32 6, %v256
  %v258 = vrot.slane %v110, %v257
  %v259 = vmul.f32 %v253, %v258
  %v260 = vadd.f32 %v250, %v259
  %261 = vset.pattern.permute.xlu0 15
  %262 = vperm.xlu0 %261, %v25
  %v263 = vpop.permute.xlu0 %262
  %v265 = vlaneseq
  %v266 = vshrl.u32 %v265, 7
  %v267 = vsub.s32 7, %v266
  %v268 = vrot.slane %v110, %v267
  %v269 = vmul.f32 %v263, %v268
  %v270 = vadd.f32 %v260, %v269
  %272 = vset.pattern.permute.xlu0 0
  %273 = vperm.xlu0 %272, %v26
  %v274 = vpop.permute.xlu0 %273
  %v276 = vadd.f32 %v270, %v274
  %v278 = vrot.slane %v276, 1
  %v280 = vmax.f32 %v276, %v278
  %v281 = vrot.slane %v276, 2
  %v283 = vmax.f32 %v280, %v281
  %v284 = vlaneseq
  %v285 = vshrl.u32 %v284, 7
  %v286 = vsub.s32 0, %v285
  %v287 = vrot.slane %v283, %v286
  %v288 = vsub.f32 %v276, %v287
  %v289 = vmul.f32 %v288, 1.442695
  %v290 = vpow.pop %v289
  %v292 = vrot.slane %v290, 1
  %v294 = vadd.f32 %v290, %v292
  %v295 = vrot.slane %v290, 2
  %v297 = vadd.f32 %v294, %v295
  %v298 = vrcp.pop %v297
  %v299 = vmul.f32 %v297, %v298
  %v300 = vsub.f32 2.0, %v299
  %v301 = vmul.f32 %v298, %v300
  %v302 = vlaneseq
  %v303 = vshrl.u32 %v302, 7
  %v304 = vsub.s32 0, %v303
  %v305 = vrot.slane %v301, %v304
  %v306 = vmul.f32 %v290, %v305
  %307 = vst [vmem:[%s5] sm:$0xff] %v306
  // Predicated region
  $region22: #{mlp_forward.1} parent=0 // pred_check
    _
  $region23: #{mlp_forward.1} parent=0 // pred_check_branch
    %309 = sbr.rel (0) target = $region25
  $region24: #{mlp_forward.1} parent=0 // pred_region
    _
  $region25: #{mlp_forward.1} parent=0 // pred_fallthru
    _
  // Predicated region
  $region26: #{mlp_forward.1} parent=0 // pred_check
    _
  $region27: #{mlp_forward.1} parent=0 // pred_check_branch
    %311 = sbr.rel (0) target = $region29
  $region28: #{mlp_forward.1} parent=0 // pred_region
    _
  $region29: #{mlp_forward.1} parent=0 // pred_fallthru
    _

</llo_original>
